<compile_context>
chip_gen: v7x
topology: tpu7x:2x2x1
jax: 0.10.0
libtpu: 0.0.40
codegen_flags: <defaults>
</compile_context>

<pallas_src>
import functools

import jax
import jax.numpy as jnp
from jax.experimental import pallas as pl
from jax.experimental.pallas import tpu as pltpu

_LANE = 128


# --------------------------------------------------------------------------- #
# Kernel
# --------------------------------------------------------------------------- #
def _blv_kernel(pred_ref, tgt_ref, *rest, ignore_index, has_noise, has_weight,
                emit_pixel, unroll):
    """One (C, R, 128) slab of logits -> lane-dense per-pixel CE, or an
    (8, 128) partial-sum block (mean/sum path).

    Class axis handled by a fori_loop so only (R, 128) f32 temporaries are
    live (no (C,R,128) iota / exp / noise buffers)."""
    idx = 0
    if has_noise:
        noise_ref = rest[idx]; idx += 1
    if has_weight:
        w_ref = rest[idx]; idx += 1
    out_ref = rest[idx]

    C, R, L = pred_ref.shape
    tgt = tgt_ref[...]                                        # (R, L) int32

    def logit(c):
        z = pred_ref[c].astype(jnp.float32)                   # bf16 upcasts here
        if has_noise:
            z = z + noise_ref[c].astype(jnp.float32)          # pre-scaled |noise|
        return z                                              # (R, L) f32

    # Pass 1: pixel-wise max over classes (numerical stability).
    m = jax.lax.fori_loop(1, C, lambda c, acc: jnp.maximum(acc, logit(c)),
                          logit(0), unroll=unroll)

    # Pass 2: sum_c exp(z_c - m) and z at the target class.
    # NOTE: labels outside [0, C) other than ignore_index silently give z_t = 0
    # (loss = lse); torch's F.cross_entropy would raise for those.
    def acc_body(c, carry):
        s, zt = carry
        z = logit(c)
        s = s + jnp.exp(z - m)
        zt = zt + jnp.where(tgt == c, z, 0.0)
        return s, zt

    zeros = jnp.zeros_like(m)
    s, zt = jax.lax.fori_loop(0, C, acc_body, (zeros, zeros), unroll=unroll)

    per_pix = jnp.where(tgt != ignore_index, m + jnp.log(s) - zt, 0.0)
    if has_weight:
        per_pix = per_pix * w_ref[...].astype(jnp.float32)

    if emit_pixel:
        out_ref[...] = per_pix                                # lane-dense store
    else:
        # Fold per-tile partials into one (8, 128) slab; wrapper finishes the
        # reduction, so the whole grid stays "parallel" (no carried accumulator).
        if R % 8 == 0:
            part8 = per_pix.reshape(R // 8, 8, L).sum(axis=0)
        else:  # tiny-shape fallback (R < 8): put the row-sum into sublane 0
            row = jax.lax.broadcasted_iota(jnp.int32, (8, L), 0)
            part8 = jnp.where(row == 0,
                              jnp.sum(per_pix, axis=0, keepdims=True), 0.0)
        out_ref[0] = part8


# --------------------------------------------------------------------------- #
# Host-side helpers
# --------------------------------------------------------------------------- #
def _class_scale(cls_num_list):
    cls = jnp.asarray(cls_num_list, jnp.float32)
    freq = jnp.log(jnp.sum(cls)) - jnp.log(cls)               # self.frequency_list
    return freq / jnp.max(freq)                               # (C,)


def _make_perturbation(key, shape_ncsl, cls_num_list, sigma):
    """|clamp(N(0, sigma), -1, 1)| * freq_c / max(freq), shaped (N, C, SB, 128)."""
    scale = _class_scale(cls_num_list)
    noise = sigma * jax.random.normal(key, shape_ncsl, dtype=jnp.float32)
    return jnp.abs(jnp.clip(noise, -1.0, 1.0)) * scale[None, :, None, None]


def _vmem_capacity_bytes():
    """Generation-aware VMEM capacity (v7x: 64MiB, v5e/v6e: 128MiB); safe default."""
    cap = 64 * 1024 * 1024
    try:
        if jax.default_backend() == "tpu":
            info = pltpu.get_tpu_info()
            cap = int(getattr(info, "vmem_capacity_bytes", cap)) or cap
    except Exception:
        pass
    return cap


def _pick_tile_rows(sb, n_batch, per_row_bytes, budget_bytes, min_programs=4):
    """Largest row-block that divides `sb`, satisfies the (8,128) sublane rule
    (multiple of 8 or equal to sb), fits the VMEM budget, and — where possible —
    leaves at least `min_programs` grid steps so both v7x TCs stay busy."""
    cap = max(1, budget_bytes // per_row_bytes)
    cands = [d for d in range(1, sb + 1)
             if sb % d == 0 and (d % 8 == 0 or d == sb)]
    fitting = [d for d in cands if d <= cap]
    if not fitting:
        return min(cands)
    busy = [d for d in fitting if n_batch * (sb // d) >= min_programs]
    return max(busy) if busy else max(fitting)


# --------------------------------------------------------------------------- #
# Public entry point
# --------------------------------------------------------------------------- #
def blv_loss(pred_nchw, target, weight, cls_num_list, *, sigma=4.0,
             ignore_index=255, reduction='mean', avg_factor=None, seed=0):
    assert reduction in ('none', 'mean', 'sum')
    if avg_factor is not None and reduction == 'sum':
        raise ValueError('avg_factor can not be used with reduction="sum"')

    N, C, H, W = pred_nchw.shape
    S = H * W
    # TODO(synk): pad the flattened spatial dim when H*W is not a multiple of 128.
    assert S % _LANE == 0, "H*W must be a multiple of 128"
    SB = S // _LANE

    has_noise = float(sigma) != 0.0
    has_weight = weight is not None
    emit_pixel = (reduction == 'none')

    pred_item = pred_nchw.dtype.itemsize
    w_item = weight.dtype.itemsize if has_weight else 0

    # ---- VMEM budget: double-buffered blocks + live f32 temporaries ----
    vmem_cap = _vmem_capacity_bytes()
    vmem_limit = min((vmem_cap * 3) // 4, 96 * 1024 * 1024)   # 48MiB v7x, 96MiB v5e/v6e
    tile_budget = (vmem_limit * 3) // 4                        # headroom for pipeline internals

    per_row = 2 * C * _LANE * pred_item                        # pred (x2 double buffer)
    if has_noise:
        per_row += 2 * C * _LANE * pred_item                   # perturbation tensor
    per_row += 2 * _LANE * 4                                   # target (int32)
    if has_weight:
        per_row += 2 * _LANE * w_item
    if emit_pixel:
        per_row += 2 * _LANE * 4                               # per-pixel loss output
    per_row += 12 * _LANE * 4                                  # live (R,128) f32 temporaries

    tile_r = _pick_tile_rows(SB, N, per_row, tile_budget)
    num_s = SB // tile_r

    # Free reshapes only: no transpose, no host dtype cast of pred / weight.
    pred4 = pred_nchw.reshape(N, C, SB, _LANE)
    tgt3 = target.reshape(N, SB, _LANE).astype(jnp.int32)

    in_specs = [
        pl.BlockSpec((None, C, tile_r, _LANE), lambda n, s: (n, 0, s, 0)),  # pred
        pl.BlockSpec((None, tile_r, _LANE), lambda n, s: (n, s, 0)),        # target
    ]
    inputs = [pred4, tgt3]

    if has_noise:
        # TODO(synk): the on-chip PRNG (pltpu.prng_seed/stateful_normal) would avoid
        # this HBM tensor but has no CPU/interpret lowering; noise is drawn here with
        # jax.random (pre-scaled by freq_c/max(freq)), stored in pred's dtype.
        pert = _make_perturbation(jax.random.PRNGKey(seed), (N, C, SB, _LANE),
                                  cls_num_list, float(sigma)).astype(pred_nchw.dtype)
        in_specs.append(pl.BlockSpec((None, C, tile_r, _LANE),
                                     lambda n, s: (n, 0, s, 0)))
        inputs.append(pert)

    if has_weight:
        in_specs.append(pl.BlockSpec((None, tile_r, _LANE),
                                     lambda n, s: (n, s, 0)))
        inputs.append(weight.reshape(N, SB, _LANE))            # native dtype; upcast in-kernel

    if emit_pixel:
        out_shape = jax.ShapeDtypeStruct((N, SB, _LANE), jnp.float32)
        out_specs = pl.BlockSpec((None, tile_r, _LANE), lambda n, s: (n, s, 0))
    else:
        out_shape = jax.ShapeDtypeStruct((N * num_s, 8, _LANE), jnp.float32)
        out_specs = pl.BlockSpec((1, 8, _LANE), lambda n, s: (n * num_s + s, 0, 0))

    kernel = functools.partial(
        _blv_kernel, ignore_index=int(ignore_index), has_noise=has_noise,
        has_weight=has_weight, emit_pixel=emit_pixel, unroll=(C <= 32))

    out = pl.pallas_call(
        kernel,
        out_shape=out_shape,
        grid=(N, num_s),
        in_specs=in_specs,
        out_specs=out_specs,
        compiler_params=pltpu.CompilerParams(
            dimension_semantics=("parallel", "parallel"),
            vmem_limit_bytes=int(vmem_limit)),
    )(*inputs)

    # ---- weight_reduce_loss semantics ----
    if reduction == 'none':
        return out.reshape(N, H, W)
    total = jnp.sum(out)
    if reduction == 'sum':
        return total
    if avg_factor is None:
        return total / (N * S)
    return total / avg_factor


# --------------------------------------------------------------------------- #
# Pure-JAX reference (per-pixel weighted CE) + self test
# --------------------------------------------------------------------------- #
def _reference_ce(pred_nchw, target, weight, *, ignore_index):
    N, C, H, W = pred_nchw.shape
    logits = jnp.transpose(pred_nchw, (0, 2, 3, 1)).astype(jnp.float32)  # NHWC
    lse = jax.scipy.special.logsumexp(logits, axis=-1)
    tgt = target.astype(jnp.int32)
    z_t = jnp.take_along_axis(logits, jnp.clip(tgt, 0, C - 1)[..., None],
                              axis=-1)[..., 0]
    loss = jnp.where(tgt != ignore_index, lse - z_t, 0.0)
    if weight is not None:
        loss = loss * weight.astype(jnp.float32)
    return loss  # (N, H, W)


if __name__ == "__main__":
    key = jax.random.PRNGKey(0)
    k_pred, k_tgt, k_w, k_ign = jax.random.split(key, 4)

    N, C, H, W = 2, 4, 16, 16
    ignore_index = 255
    cls_num_list = [100.0, 200.0, 50.0, 400.0]

    pred = jax.random.normal(k_pred, (N, C, H, W), dtype=jnp.float32)
    target = jax.random.randint(k_tgt, (N, H, W), 0, C, dtype=jnp.int32)
    ign_mask = jax.random.uniform(k_ign, (N, H, W)) < 0.1
    target = jnp.where(ign_mask, ignore_index, target)
    weight = jax.random.uniform(k_w, (N, H, W), dtype=jnp.float32)

    ref_px = _reference_ce(pred, target, weight, ignore_index=ignore_index)

    # 1) sigma=0: exact check of the CE + reduction machinery.
    out_px = blv_loss(pred, target, weight, cls_num_list, sigma=0.0,
                      ignore_index=ignore_index, reduction='none')
    out_px = jax.block_until_ready(out_px)
    assert out_px.shape == (N, H, W)
    assert jnp.allclose(out_px, ref_px, atol=1e-4, rtol=1e-4)

    out_mean = blv_loss(pred, target, weight, cls_num_list, sigma=0.0,
                        ignore_index=ignore_index, reduction='mean')
    assert jnp.allclose(out_mean, ref_px.mean(), atol=1e-4, rtol=1e-4)

    out_avg = blv_loss(pred, target, weight, cls_num_list, sigma=0.0,
                       ignore_index=ignore_index, reduction='mean',
                       avg_factor=123.0)
    assert jnp.allclose(out_avg, ref_px.sum() / 123.0, atol=1e-4, rtol=1e-4)

    # weight=None fast path + 'sum' reduction.
    ref_px_nw = _reference_ce(pred, target, None, ignore_index=ignore_index)
    out_sum_nw = blv_loss(pred, target, None, cls_num_list, sigma=0.0,
                          ignore_index=ignore_index, reduction='sum')
    assert jnp.allclose(out_sum_nw, ref_px_nw.sum(), atol=1e-3, rtol=1e-4)

    # 2) sigma=4: noise is drawn host-side from the same seed, so the noisy path
    #    can be checked exactly against the reference with the same perturbation.
    seed = 1234
    pert = _make_perturbation(jax.random.PRNGKey(seed),
                              (N, C, H * W // _LANE, _LANE),
                              cls_num_list, 4.0).reshape(N, C, H, W)
    ref_noisy_px = _reference_ce(pred + pert, target, weight,
                                 ignore_index=ignore_index)
    out_noisy = blv_loss(pred, target, weight, cls_num_list, sigma=4.0,
                         ignore_index=ignore_index, reduction='mean', seed=seed)
    out_noisy = jax.block_until_ready(out_noisy)
    assert jnp.allclose(out_noisy, ref_noisy_px.mean(), atol=1e-4, rtol=1e-4)

    print("KERNEL_OK")
</pallas_src>

<mosaic_0001>
module attributes {stable_mosaic.version = 11 : i64} {
  func.func @_blv_kernel(%arg0: i32, %arg1: i32, %arg2: memref<1x4x2x128xf32, #tpu.memory_space<vmem>>, %arg3: memref<1x2x128xi32, #tpu.memory_space<vmem>>, %arg4: memref<1x2x128xf32, #tpu.memory_space<vmem>>, %arg5: memref<1x2x128xf32, #tpu.memory_space<vmem>>) attributes {dimension_semantics = [#tpu.dimension_semantics<parallel>, #tpu.dimension_semantics<parallel>], iteration_bounds = array<i64: 2, 1>, scalar_prefetch = 0 : i64, scratch_operands = 0 : i64, tpu.core_type = #tpu.core_type<tc>, window_params = [{transform_indices = @transform_0, window_bounds = array<i64: 1, 4, 2, 128>}, {transform_indices = @transform_1, window_bounds = array<i64: 1, 2, 128>}, {transform_indices = @transform_2, window_bounds = array<i64: 1, 2, 128>}, {transform_indices = @transform_3, window_bounds = array<i64: 1, 2, 128>}]} {
    %c0 = arith.constant 0 : index
    %c0_0 = arith.constant 0 : index
    %c0_1 = arith.constant 0 : index
    %0 = vector.load %arg3[%c0, %c0_0, %c0_1] : memref<1x2x128xi32, #tpu.memory_space<vmem>>, vector<1x2x128xi32>
    %1 = vector.shape_cast %0 : vector<1x2x128xi32> to vector<2x128xi32>
    %c0_2 = arith.constant 0 : index
    %c0_3 = arith.constant 0 : index
    %c0_4 = arith.constant 0 : index
    %c0_5 = arith.constant 0 : index
    %2 = vector.load %arg2[%c0_2, %c0_3, %c0_4, %c0_5] : memref<1x4x2x128xf32, #tpu.memory_space<vmem>>, vector<1x1x2x128xf32>
    %3 = vector.shape_cast %2 : vector<1x1x2x128xf32> to vector<2x128xf32>
    %c1_i32 = arith.constant 1 : i32
    %c0_6 = arith.constant 0 : index
    %4 = arith.index_cast %c1_i32 : i32 to index
    %c0_7 = arith.constant 0 : index
    %c0_8 = arith.constant 0 : index
    %5 = vector.load %arg2[%c0_6, %4, %c0_7, %c0_8] : memref<1x4x2x128xf32, #tpu.memory_space<vmem>>, vector<1x1x2x128xf32>
    %6 = vector.shape_cast %5 : vector<1x1x2x128xf32> to vector<2x128xf32>
    %7 = arith.maximumf %3, %6 : vector<2x128xf32>
    %c2_i32 = arith.constant 2 : i32
    %c0_9 = arith.constant 0 : index
    %8 = arith.index_cast %c2_i32 : i32 to index
    %c0_10 = arith.constant 0 : index
    %c0_11 = arith.constant 0 : index
    %9 = vector.load %arg2[%c0_9, %8, %c0_10, %c0_11] : memref<1x4x2x128xf32, #tpu.memory_space<vmem>>, vector<1x1x2x128xf32>
    %10 = vector.shape_cast %9 : vector<1x1x2x128xf32> to vector<2x128xf32>
    %11 = arith.maximumf %7, %10 : vector<2x128xf32>
    %c3_i32 = arith.constant 3 : i32
    %c0_12 = arith.constant 0 : index
    %12 = arith.index_cast %c3_i32 : i32 to index
    %c0_13 = arith.constant 0 : index
    %c0_14 = arith.constant 0 : index
    %13 = vector.load %arg2[%c0_12, %12, %c0_13, %c0_14] : memref<1x4x2x128xf32, #tpu.memory_space<vmem>>, vector<1x1x2x128xf32>
    %14 = vector.shape_cast %13 : vector<1x1x2x128xf32> to vector<2x128xf32>
    %15 = arith.maximumf %11, %14 : vector<2x128xf32>
    %c3_i32_15 = arith.constant 3 : i32
    %cst = arith.constant 0.000000e+00 : f32
    %16 = vector.broadcast %cst : f32 to vector<2x128xf32>
    %c0_i32 = arith.constant 0 : i32
    %c0_16 = arith.constant 0 : index
    %17 = arith.index_cast %c0_i32 : i32 to index
    %c0_17 = arith.constant 0 : index
    %c0_18 = arith.constant 0 : index
    %18 = vector.load %arg2[%c0_16, %17, %c0_17, %c0_18] : memref<1x4x2x128xf32, #tpu.memory_space<vmem>>, vector<1x1x2x128xf32>
    %19 = vector.shape_cast %18 : vector<1x1x2x128xf32> to vector<2x128xf32>
    %20 = arith.subf %19, %15 : vector<2x128xf32>
    %21 = math.exp %20 : vector<2x128xf32>
    %22 = arith.addf %16, %21 : vector<2x128xf32>
    %23 = vector.broadcast %c0_i32 : i32 to vector<2x128xi32>
    %24 = arith.cmpi eq, %1, %23 : vector<2x128xi32>
    %cst_19 = arith.constant 0.000000e+00 : f32
    %25 = vector.broadcast %cst_19 : f32 to vector<2x128xf32>
    %26 = arith.select %24, %19, %25 : vector<2x128xi1>, vector<2x128xf32>
    %27 = arith.addf %16, %26 : vector<2x128xf32>
    %c1_i32_20 = arith.constant 1 : i32
    %c0_21 = arith.constant 0 : index
    %28 = arith.index_cast %c1_i32_20 : i32 to index
    %c0_22 = arith.constant 0 : index
    %c0_23 = arith.constant 0 : index
    %29 = vector.load %arg2[%c0_21, %28, %c0_22, %c0_23] : memref<1x4x2x128xf32, #tpu.memory_space<vmem>>, vector<1x1x2x128xf32>
    %30 = vector.shape_cast %29 : vector<1x1x2x128xf32> to vector<2x128xf32>
    %31 = arith.subf %30, %15 : vector<2x128xf32>
    %32 = math.exp %31 : vector<2x128xf32>
    %33 = arith.addf %22, %32 : vector<2x128xf32>
    %34 = vector.broadcast %c1_i32_20 : i32 to vector<2x128xi32>
    %35 = arith.cmpi eq, %1, %34 : vector<2x128xi32>
    %cst_24 = arith.constant 0.000000e+00 : f32
    %36 = vector.broadcast %cst_24 : f32 to vector<2x128xf32>
    %37 = arith.select %35, %30, %36 : vector<2x128xi1>, vector<2x128xf32>
    %38 = arith.addf %27, %37 : vector<2x128xf32>
    %c2_i32_25 = arith.constant 2 : i32
    %c0_26 = arith.constant 0 : index
    %39 = arith.index_cast %c2_i32_25 : i32 to index
    %c0_27 = arith.constant 0 : index
    %c0_28 = arith.constant 0 : index
    %40 = vector.load %arg2[%c0_26, %39, %c0_27, %c0_28] : memref<1x4x2x128xf32, #tpu.memory_space<vmem>>, vector<1x1x2x128xf32>
    %41 = vector.shape_cast %40 : vector<1x1x2x128xf32> to vector<2x128xf32>
    %42 = arith.subf %41, %15 : vector<2x128xf32>
    %43 = math.exp %42 : vector<2x128xf32>
    %44 = arith.addf %33, %43 : vector<2x128xf32>
    %45 = vector.broadcast %c2_i32_25 : i32 to vector<2x128xi32>
    %46 = arith.cmpi eq, %1, %45 : vector<2x128xi32>
    %cst_29 = arith.constant 0.000000e+00 : f32
    %47 = vector.broadcast %cst_29 : f32 to vector<2x128xf32>
    %48 = arith.select %46, %41, %47 : vector<2x128xi1>, vector<2x128xf32>
    %49 = arith.addf %38, %48 : vector<2x128xf32>
    %c3_i32_30 = arith.constant 3 : i32
    %c0_31 = arith.constant 0 : index
    %50 = arith.index_cast %c3_i32_30 : i32 to index
    %c0_32 = arith.constant 0 : index
    %c0_33 = arith.constant 0 : index
    %51 = vector.load %arg2[%c0_31, %50, %c0_32, %c0_33] : memref<1x4x2x128xf32, #tpu.memory_space<vmem>>, vector<1x1x2x128xf32>
    %52 = vector.shape_cast %51 : vector<1x1x2x128xf32> to vector<2x128xf32>
    %53 = arith.subf %52, %15 : vector<2x128xf32>
    %54 = math.exp %53 : vector<2x128xf32>
    %55 = arith.addf %44, %54 : vector<2x128xf32>
    %56 = vector.broadcast %c3_i32_30 : i32 to vector<2x128xi32>
    %57 = arith.cmpi eq, %1, %56 : vector<2x128xi32>
    %cst_34 = arith.constant 0.000000e+00 : f32
    %58 = vector.broadcast %cst_34 : f32 to vector<2x128xf32>
    %59 = arith.select %57, %52, %58 : vector<2x128xi1>, vector<2x128xf32>
    %60 = arith.addf %49, %59 : vector<2x128xf32>
    %c4_i32 = arith.constant 4 : i32
    %c255_i32 = arith.constant 255 : i32
    %61 = vector.broadcast %c255_i32 : i32 to vector<2x128xi32>
    %62 = arith.cmpi ne, %1, %61 : vector<2x128xi32>
    %63 = math.log %55 : vector<2x128xf32>
    %64 = arith.addf %15, %63 : vector<2x128xf32>
    %65 = arith.subf %64, %60 : vector<2x128xf32>
    %cst_35 = arith.constant 0.000000e+00 : f32
    %66 = vector.broadcast %cst_35 : f32 to vector<2x128xf32>
    %67 = arith.select %62, %65, %66 : vector<2x128xi1>, vector<2x128xf32>
    %c0_36 = arith.constant 0 : index
    %c0_37 = arith.constant 0 : index
    %c0_38 = arith.constant 0 : index
    %68 = vector.load %arg4[%c0_36, %c0_37, %c0_38] : memref<1x2x128xf32, #tpu.memory_space<vmem>>, vector<1x2x128xf32>
    %69 = vector.shape_cast %68 : vector<1x2x128xf32> to vector<2x128xf32>
    %70 = arith.mulf %67, %69 : vector<2x128xf32>
    %c0_39 = arith.constant 0 : index
    %c0_40 = arith.constant 0 : index
    %c0_41 = arith.constant 0 : index
    %71 = vector.load %arg5[%c0_39, %c0_40, %c0_41] : memref<1x2x128xf32, #tpu.memory_space<vmem>>, vector<1x2x128xf32>
    %72 = vector.shape_cast %71 : vector<1x2x128xf32> to vector<2x128xf32>
    %73 = vector.shape_cast %70 : vector<2x128xf32> to vector<1x2x128xf32>
    tpu.vector_store %arg5[%c0_39, %c0_40, %c0_41], %73 {strides = array<i32>} : memref<1x2x128xf32, #tpu.memory_space<vmem>>, vector<1x2x128xf32>,
    return
  }
  func.func @transform_0(%arg0: i32, %arg1: i32) -> (i32, i32, i32, i32) {
    %c0_i32 = arith.constant 0 : i32
    %c0_i32_0 = arith.constant 0 : i32
    %c0_i32_1 = arith.constant 0 : i32
    return %arg0, %c0_i32, %arg1, %c0_i32_0 : i32, i32, i32, i32
  }
  func.func @transform_1(%arg0: i32, %arg1: i32) -> (i32, i32, i32) {
    %c0_i32 = arith.constant 0 : i32
    %c0_i32_0 = arith.constant 0 : i32
    return %arg0, %arg1, %c0_i32 : i32, i32, i32
  }
  func.func @transform_2(%arg0: i32, %arg1: i32) -> (i32, i32, i32) {
    %c0_i32 = arith.constant 0 : i32
    %c0_i32_0 = arith.constant 0 : i32
    return %arg0, %arg1, %c0_i32 : i32, i32, i32
  }
  func.func @transform_3(%arg0: i32, %arg1: i32) -> (i32, i32, i32) {
    %c0_i32 = arith.constant 0 : i32
    %c0_i32_0 = arith.constant 0 : i32
    return %arg0, %arg1, %c0_i32 : i32, i32, i32
  }
}

</mosaic_0001>

<llo_original>
// kernel: tpu_custom_call.1
$region0: #{tpu_custom_call.1}
  #allocation0 [shape = 'u32[]', space=smem, size = 0x4, offset = 0x4, fixed_abs, tag = 'smem constant byte address 0x4 - core index']
  #allocation1 [shape = 'u32[144,128]{1,0:T(1,128)}', space=vmem, size = 0x12000, scoped, tag = 'internal scratch']
  %s0 = inlined_call_operand.hbm [shape: f32[2,4,2,128], index: 0, kind: input, shape index: {}]
  %s1 = inlined_call_operand.hbm [shape: s32[2,2,128], index: 1, kind: input, shape index: {}]
  %s2 = inlined_call_operand.vmem [shape: f32[2,2,128], index: 2, kind: input, shape index: {}]
  %s3 = inlined_call_operand.hbm [shape: f32[2,2,128], index: 3, kind: output, shape index: {}]
  %s4 = sld [smem:[#allocation0]]
  $region53: #{tpu_custom_call.1} parent=0
    _
  %s6 = ssub.s32 1, %s4
  %s7 = scalar_select 0, %s6, %s4
  $region1: #{tpu_custom_call.1} parent=0
    #allocation2 [shape = 'u8[8192]{0}', space=vmem, size = 0x2000, scoped, tag = 'input window, operand 0']
    #allocation3 [shape = 's32[2]{0}', space=sflag, size = 0x8, scoped, tag = 'scoped memory for tpu_custom_call.1']
    #allocation4 [shape = 's32[2]{0}', space=sflag, size = 0x8, scoped, tag = 'scoped memory for tpu_custom_call.1']
    #allocation5 [shape = 'u8[2048]{0}', space=vmem, size = 0x800, scoped, tag = 'input window, operand 1']
    #allocation6 [shape = 's32[2]{0}', space=sflag, size = 0x8, scoped, tag = 'scoped memory for tpu_custom_call.1']
    #allocation7 [shape = 'u8[2048]{0}', space=vmem, size = 0x800, scoped, tag = 'output window, operand 0']
    %8 = vsyncpa [#allocation3], 0
    %s9 = scalar_lea.sflag [#allocation3], 1
    %10 = vsyncpa %s9, 0
    %11 = vsyncpa [#allocation6], 0
    %s12 = scalar_lea.sflag [#allocation6], 1
    %13 = vsyncpa %s12, 0
    %14 = vsyncpa [#allocation4], 0
    %s15 = scalar_lea.sflag [#allocation4], 1
    %16 = vsyncpa %s15, 0
    loop: start=0, step=1, limit=4
    $region2: #{tpu_custom_call.1} parent=1 // loop_pre_header
      _
    $region3: #{tpu_custom_call.1} parent=1 // loop_header
      %s18 = sphi 0, %s22
      %p19 = scmp.ge.s32.totalorder %s18, 4
      %s25 = sphi 0, %s37
      %s26 = sphi 0, %s33
      %s27 = sphi 0, %s25
      %s28 = sphi 0, %s26
      %s29 = sphi 0, %s27
      %s30 = sphi 0, %s28
      %s42 = sphi 0, %s44
      %s45 = sphi 0, %s42
      %s46 = sphi 0, %s45
      %s62 = sphi 0, %s46
      %s70 = sphi 0, %s72
      %s73 = sphi 0, %s70
      %s74 = sphi 0, %s73
      %s90 = sphi 0, %s74
      %s98 = sphi 0, %s100
      %s101 = sphi 0, %s98
      %s102 = sphi 0, %s101
      %s118 = sphi 0, %s102
      %s126 = sphi 0, %s128
      %s129 = sphi 0, %s126
      %s130 = sphi 0, %s129
      %s146 = sphi 0, %s130
    $region4: #{tpu_custom_call.1} parent=1 // loop_header_branch
      %21 = sbr.rel (%p19) target = $region8
    $region5: #{tpu_custom_call.1} parent=1 // loop_body
      %s23 = ssub.s32 %s18, 1
      %s24 = ssub.s32 %s18, 2
      %s31 = sadd.s32 1, %s26
      %p32 = scmp.ge.s32.totalorder %s31, 1
      %s33 = scalar_select %p32, 0, %s31
      %s34 = sadd.s32 1, %s25
      %s35 = scalar_select %p32, %s34, %s25
      %p36 = scmp.ge.s32.totalorder %s35, 2
      %s37 = scalar_select %p36, 0, %s35
      %s38 = ssub.s32 %s25, %s37
      %s39 = ssub.s32 %s26, %s33
      %s40 = sor.u32 %s38, %s39
      %p41 = scmp.eq.s32.totalorder %s40, 0
      %s43 = sadd.s32 %s42, 1
      %s44 = scalar_select %p41, %s42, %s43
      %p47 = pneg %p41
      %p48 = scmp.eq.s32.totalorder %s18, 1
      %p49 = por %p47, %p48
      %p50 = scmp.ne.s32.totalorder %s42, %s45
      %p51 = scmp.eq.s32.totalorder %s18, 0
      %p52 = por %p50, %p51
      %p53 = scmp.ne.s32.totalorder %s42, %s45
      %p54 = scmp.eq.s32.totalorder %s23, 1
      %p55 = por %p53, %p54
      %p56 = scmp.ne.s32.totalorder %s45, %s46
      %p57 = scmp.eq.s32.totalorder %s23, 0
      %p58 = por %p56, %p57
      %p59 = scmp.ne.s32.totalorder %s45, %s46
      %p60 = scmp.eq.s32.totalorder %s24, 1
      %p61 = por %p59, %p60
      %p63 = scmp.ne.s32.totalorder %s46, %s62
      %p64 = scmp.eq.s32.totalorder %s24, 0
      %p65 = por %p63, %p64
      %s66 = ssub.s32 %s25, %s37
      %s67 = ssub.s32 %s26, %s33
      %s68 = sor.u32 %s66, %s67
      %p69 = scmp.eq.s32.totalorder %s68, 0
      %s71 = sadd.s32 %s70, 1
      %s72 = scalar_select %p69, %s70, %s71
      %p75 = pneg %p69
      %p76 = scmp.eq.s32.totalorder %s18, 1
      %p77 = por %p75, %p76
      %p78 = scmp.ne.s32.totalorder %s70, %s73
      %p79 = scmp.eq.s32.totalorder %s18, 0
      %p80 = por %p78, %p79
      %p81 = scmp.ne.s32.totalorder %s70, %s73
      %p82 = scmp.eq.s32.totalorder %s23, 1
      %p83 = por %p81, %p82
      %p84 = scmp.ne.s32.totalorder %s73, %s74
      %p85 = scmp.eq.s32.totalorder %s23, 0
      %p86 = por %p84, %p85
      %p87 = scmp.ne.s32.totalorder %s73, %s74
      %p88 = scmp.eq.s32.totalorder %s24, 1
      %p89 = por %p87, %p88
      %p91 = scmp.ne.s32.totalorder %s74, %s90
      %p92 = scmp.eq.s32.totalorder %s24, 0
      %p93 = por %p91, %p92
      %s94 = ssub.s32 %s25, %s37
      %s95 = ssub.s32 %s26, %s33
      %s96 = sor.u32 %s94, %s95
      %p97 = scmp.eq.s32.totalorder %s96, 0
      %s99 = sadd.s32 %s98, 1
      %s100 = scalar_select %p97, %s98, %s99
      %p103 = pneg %p97
      %p104 = scmp.eq.s32.totalorder %s18, 1
      %p105 = por %p103, %p104
      %p106 = scmp.ne.s32.totalorder %s98, %s101
      %p107 = scmp.eq.s32.totalorder %s18, 0
      %p108 = por %p106, %p107
      %p109 = scmp.ne.s32.totalorder %s98, %s101
      %p110 = scmp.eq.s32.totalorder %s23, 1
      %p111 = por %p109, %p110
      %p112 = scmp.ne.s32.totalorder %s101, %s102
      %p113 = scmp.eq.s32.totalorder %s23, 0
      %p114 = por %p112, %p113
      %p115 = scmp.ne.s32.totalorder %s101, %s102
      %p116 = scmp.eq.s32.totalorder %s24, 1
      %p117 = por %p115, %p116
      %p119 = scmp.ne.s32.totalorder %s102, %s118
      %p120 = scmp.eq.s32.totalorder %s24, 0
      %p121 = por %p119, %p120
      %s122 = ssub.s32 %s25, %s37
      %s123 = ssub.s32 %s26, %s33
      %s124 = sor.u32 %s122, %s123
      %p125 = scmp.eq.s32.totalorder %s124, 0
      %s127 = sadd.s32 %s126, 1
      %s128 = scalar_select %p125, %s126, %s127
      %p131 = pneg %p125
      %p132 = scmp.eq.s32.totalorder %s18, 1
      %p133 = por %p131, %p132
      %p134 = scmp.ne.s32.totalorder %s126, %s129
      %p135 = scmp.eq.s32.totalorder %s18, 0
      %p136 = por %p134, %p135
      %p137 = scmp.ne.s32.totalorder %s126, %s129
      %p138 = scmp.eq.s32.totalorder %s23, 1
      %p139 = por %p137, %p138
      %p140 = scmp.ne.s32.totalorder %s129, %s130
      %p141 = scmp.eq.s32.totalorder %s23, 0
      %p142 = por %p140, %p141
      %p143 = scmp.ne.s32.totalorder %s129, %s130
      %p144 = scmp.eq.s32.totalorder %s24, 1
      %p145 = por %p143, %p144
      %p147 = scmp.ne.s32.totalorder %s130, %s146
      %p148 = scmp.eq.s32.totalorder %s24, 0
      %p149 = por %p147, %p148
      %p150 = scmp.le.s32.totalorder 1, %s18
      %p151 = scmp.lt.s32.totalorder %s18, 3
      %p152 = pnand %p150, %p151
      %p153 = pneg %p152
      // Predicated region
      $region9: #{tpu_custom_call.1} parent=5 // pred_check
        _
      $region10: #{tpu_custom_call.1} parent=5 // pred_check_branch
        %155 = sbr.rel (%p152) target = $region12
      $region11: #{tpu_custom_call.1} parent=5 // pred_region
        %s156 = ssub.s32 %s18, 1
      $region12: #{tpu_custom_call.1} parent=5 // pred_fallthru
        _
      %p157 = scmp.lt.s32.totalorder %s18, 2
      // Predicated region
      $region13: #{tpu_custom_call.1} parent=5 // pred_check
        %p158 = pneg %p157
      $region14: #{tpu_custom_call.1} parent=5 // pred_check_branch
        %160 = sbr.rel (%p158) target = $region16
      $region15: #{tpu_custom_call.1} parent=5 // pred_region
        // Predicated region
        $region17: #{tpu_custom_call.1} parent=15 // pred_check
          %p161 = pneg %p52
        $region18: #{tpu_custom_call.1} parent=15 // pred_check_branch
          %163 = sbr.rel (%p161) target = $region20
        $region19: #{tpu_custom_call.1} parent=15 // pred_region
          %s164 = sand.u32 %s42, 1
          %s165 = scalar_lea.sflag [#allocation3], %s164
          %s166 = sand.u32 %s42, 1
          %s167 = smul.addr %s166, 8
          %s168 = scalar_lea.vmem [#allocation2], %s167
          %s170 = ssub.s32 128, 128
          %171 = vsyncadd %s165, %s170
          %s172 = smul.addr %s25, 4
          %s173 = sadd.s32 %s26, %s172
          %s174 = smul.addr %s173, 32
          %s175 = scalar_lea.hbm %s0, %s174
          %s176 = sshll.u32 %s168, 4
          %s177 = int_to_ptr.vmem [resolvable:$true] %s176
          %182 = dma.hbm_to_vmem [thread:$0]  %s175, 128, %s177, %s165, 32, 32, 2
        $region20: #{tpu_custom_call.1} parent=15 // pred_fallthru
          _
        // Predicated region
        $region21: #{tpu_custom_call.1} parent=15 // pred_check
          %p183 = pneg %p80
        $region22: #{tpu_custom_call.1} parent=15 // pred_check_branch
          %185 = sbr.rel (%p183) target = $region24
        $region23: #{tpu_custom_call.1} parent=15 // pred_region
          %s186 = sand.u32 %s70, 1
          %s187 = scalar_lea.sflag [#allocation6], %s186
          %s188 = sand.u32 %s70, 1
          %s189 = smul.addr %s188, 2
          %s190 = scalar_lea.vmem [#allocation5], %s189
          %s192 = ssub.s32 32, 32
          %193 = vsyncadd %s187, %s192
          %s194 = sadd.s32 %s26, %s25
          %s195 = smul.addr %s194, 32
          %s196 = scalar_lea.hbm %s1, %s195
          %s198 = sshll.u32 %s190, 4
          %s199 = int_to_ptr.vmem [resolvable:$true] %s198
          %201 = dma.hbm_to_vmem [thread:$0]  %s196, 32, %s199, %s187
        $region24: #{tpu_custom_call.1} parent=15 // pred_fallthru
          _
        // Predicated region
        $region25: #{tpu_custom_call.1} parent=15 // pred_check
          %p202 = pneg %p108
        $region26: #{tpu_custom_call.1} parent=15 // pred_check_branch
          %204 = sbr.rel (%p202) target = $region28
        $region27: #{tpu_custom_call.1} parent=15 // pred_region
          %p205 = scmp.lt.s32.totalorder %s25, 1
          %s206 = scalar_select %p205, %s25, 1
          %p207 = scmp.lt.s32.totalorder %s26, 0
          %s208 = scalar_select %p207, %s26, 0
          %s209 = sadd.s32 %s208, %s206
          %s210 = smul.addr %s209, 2
          %s211 = scalar_lea.vmem %s2, %s210
        $region28: #{tpu_custom_call.1} parent=15 // pred_fallthru
          _
      $region16: #{tpu_custom_call.1} parent=5 // pred_fallthru
        _
      %p212 = scmp.le.s32.totalorder 1, %s18
      %p213 = scmp.lt.s32.totalorder %s18, 3
      %p214 = pnand %p212, %p213
      %p215 = pneg %p214
      // Predicated region
      $region29: #{tpu_custom_call.1} parent=5 // pred_check
        _
      $region30: #{tpu_custom_call.1} parent=5 // pred_check_branch
        %217 = sbr.rel (%p214) target = $region32
      $region31: #{tpu_custom_call.1} parent=5 // pred_region
        %s218 = ssub.s32 %s18, 1
        %s219 = sand.u32 %s45, 1
        %s220 = scalar_lea.sflag [#allocation3], %s219
        %s221 = sand.u32 %s45, 1
        %s222 = smul.addr %s221, 8
        %s223 = scalar_lea.vmem [#allocation2], %s222
        // Predicated region
        $region33: #{tpu_custom_call.1} parent=31 // pred_check
          %p224 = pneg %p58
        $region34: #{tpu_custom_call.1} parent=31 // pred_check_branch
          %226 = sbr.rel (%p224) target = $region36
        $region35: #{tpu_custom_call.1} parent=31 // pred_region
          %227 = dma.done %s220, 128
        $region36: #{tpu_custom_call.1} parent=31 // pred_fallthru
          _
        %s228 = sand.u32 %s73, 1
        %s229 = scalar_lea.sflag [#allocation6], %s228
        %s230 = sand.u32 %s73, 1
        %s231 = smul.addr %s230, 2
        %s232 = scalar_lea.vmem [#allocation5], %s231
        // Predicated region
        $region37: #{tpu_custom_call.1} parent=31 // pred_check
          %p233 = pneg %p86
        $region38: #{tpu_custom_call.1} parent=31 // pred_check_branch
          %235 = sbr.rel (%p233) target = $region40
        $region39: #{tpu_custom_call.1} parent=31 // pred_region
          %236 = dma.done %s229, 32
        $region40: #{tpu_custom_call.1} parent=31 // pred_fallthru
          _
        %s237 = sand.u32 %s45, 1
        %s238 = scalar_lea.sflag [#allocation3], %s237
        %s239 = sand.u32 %s45, 1
        %s240 = smul.addr %s239, 8
        %s241 = scalar_lea.vmem [#allocation2], %s240
        %p242 = pneg %p58
        %p243 = pneg %p55
        %s244 = sand.u32 %s73, 1
        %s245 = scalar_lea.sflag [#allocation6], %s244
        %s246 = sand.u32 %s73, 1
        %s247 = smul.addr %s246, 2
        %s248 = scalar_lea.vmem [#allocation5], %s247
        %p249 = pneg %p86
        %p250 = pneg %p83
        %p251 = scmp.lt.s32.totalorder %s27, 1
        %s252 = scalar_select %p251, %s27, 1
        %p253 = scmp.lt.s32.totalorder %s28, 0
        %s254 = scalar_select %p253, %s28, 0
        %s255 = sadd.s32 %s254, %s252
        %s256 = smul.addr %s255, 2
        %s257 = scalar_lea.vmem %s2, %s256
        %p258 = pneg %p114
        %p259 = pneg %p111
        %p260 = pneg %p142
        %p261 = pneg %p139
        %s262 = sand.u32 %s129, 1
        %s263 = scalar_lea.sflag [#allocation4], %s262
        %s264 = sand.u32 %s129, 1
        %s265 = smul.addr %s264, 2
        %s266 = scalar_lea.vmem [#allocation7], %s265
        %p267 = scmp.lt.s32.totalorder %s27, 1
        %s268 = scalar_select %p267, %s27, 1
        %p269 = scmp.lt.s32.totalorder %s28, 0
        %s270 = scalar_select %p269, %s28, 0
        %s271 = sadd.s32 %s270, %s268
        %s272 = smul.addr %s271, 2
        %s273 = scalar_lea.vmem %s2, %s272
        %v274 = vld [vmem:[%s232] sm:$0x3]
        %v275 = vld [vmem:[%s223] sm:$0x3]
        %s276 = scalar_lea.vmem %s223, 2 [#allocation2]
        %v277 = vld [vmem:[%s276] sm:$0x3]
        %v278 = vmax.f32 %v275, %v277
        %s279 = scalar_lea.vmem %s223, 4 [#allocation2]
        %v280 = vld [vmem:[%s279] sm:$0x3]
        %v281 = vmax.f32 %v278, %v280
        %s282 = scalar_lea.vmem %s223, 6 [#allocation2]
        %v283 = vld [vmem:[%s282] sm:$0x3]
        %v284 = vmax.f32 %v281, %v283
        %v285 = vsub.f32 %v275, %v284
        %v286 = vmul.f32 %v285, 1.442695
        %v287 = vpow.pop %v286
        %v288 = vadd.f32 %v287, 0.0
        %vm289 = vcmp.eq.s32.totalorder %v274, 0
        %v290 = vsel %vm289, %v275, 0.0
        %v291 = vadd.f32 %v290, 0.0
        %v292 = vsub.f32 %v277, %v284
        %v293 = vmul.f32 %v292, 1.442695
        %v294 = vpow.pop %v293
        %v295 = vadd.f32 %v288, %v294
        %vm296 = vcmp.eq.s32.totalorder %v274, 1
        %v297 = vsel %vm296, %v277, 0.0
        %v298 = vadd.f32 %v291, %v297
        %v299 = vsub.f32 %v280, %v284
        %v300 = vmul.f32 %v299, 1.442695
        %v301 = vpow.pop %v300
        %v302 = vadd.f32 %v295, %v301
        %vm303 = vcmp.eq.s32.totalorder %v274, 2
        %v304 = vsel %vm303, %v280, 0.0
        %v305 = vadd.f32 %v298, %v304
        %v306 = vsub.f32 %v283, %v284
        %v307 = vmul.f32 %v306, 1.442695
        %v308 = vpow.pop %v307
        %v309 = vadd.f32 %v302, %v308
        %vm310 = vcmp.eq.s32.totalorder %v274, 3
        %v311 = vsel %vm310, %v283, 0.0
        %v312 = vadd.f32 %v305, %v311
        %vm313 = vcmp.ne.s32.totalorder %v274, 255
        %v314 = vlog2.pop %v309
        %v315 = vmul.f32 %v314, 0.6931472
        %v316 = vadd.f32 %v284, %v315
        %v317 = vsub.f32 %v316, %v312
        %v318 = vsel %vm313, %v317, 0.0
        %v319 = vld [vmem:[%s273] sm:$0x3]
        %v320 = vmul.f32 %v318, %v319
        %321 = vst [vmem:[%s266] sm:$0x3] %v320
        %s322 = sand.u32 %s129, 1
        %s323 = scalar_lea.sflag [#allocation4], %s322
        %s324 = sand.u32 %s129, 1
        %s325 = smul.addr %s324, 2
        %s326 = scalar_lea.vmem [#allocation7], %s325
        // Predicated region
        $region41: #{tpu_custom_call.1} parent=31 // pred_check
          %p327 = pneg %p139
        $region42: #{tpu_custom_call.1} parent=31 // pred_check_branch
          %329 = sbr.rel (%p327) target = $region44
        $region43: #{tpu_custom_call.1} parent=31 // pred_region
          %s331 = ssub.s32 32, 32
          %332 = vsyncadd %s323, %s331
          %s333 = sadd.s32 %s28, %s27
          %s334 = smul.addr %s333, 32
          %s335 = scalar_lea.hbm %s3, %s334
          %s337 = sshll.u32 %s326, 4
          %s338 = int_to_ptr.vmem [resolvable:$true] %s337
          %340 = dma.vmem_to_hbm [thread:$0]  %s338, 32, %s335, %s323
        $region44: #{tpu_custom_call.1} parent=31 // pred_fallthru
          _
      $region32: #{tpu_custom_call.1} parent=5 // pred_fallthru
        _
      %p341 = scmp.le.s32.totalorder 2, %s18
      // Predicated region
      $region45: #{tpu_custom_call.1} parent=5 // pred_check
        %p342 = pneg %p341
      $region46: #{tpu_custom_call.1} parent=5 // pred_check_branch
        %344 = sbr.rel (%p342) target = $region48
      $region47: #{tpu_custom_call.1} parent=5 // pred_region
        %s345 = ssub.s32 %s18, 2
        // Predicated region
        $region49: #{tpu_custom_call.1} parent=47 // pred_check
          %p346 = pneg %p145
        $region50: #{tpu_custom_call.1} parent=47 // pred_check_branch
          %348 = sbr.rel (%p346) target = $region52
        $region51: #{tpu_custom_call.1} parent=47 // pred_region
          %s349 = sand.u32 %s130, 1
          %s350 = scalar_lea.sflag [#allocation4], %s349
          %s351 = sand.u32 %s130, 1
          %s352 = smul.addr %s351, 2
          %s353 = scalar_lea.vmem [#allocation7], %s352
          %354 = dma.done %s350, 32
        $region52: #{tpu_custom_call.1} parent=47 // pred_fallthru
          _
      $region48: #{tpu_custom_call.1} parent=5 // pred_fallthru
        _
    $region6: #{tpu_custom_call.1} parent=1 // loop_footer
      %s22 = sadd.s32 1, %s18
    $region7: #{tpu_custom_call.1} parent=1 // loop_footer_branch
      %17 = sbr.rel target = $region3
    $region8: #{tpu_custom_call.1} parent=1 // loop_exit
      _
    %355 = vsyncpa [#allocation3], 1
    %s356 = scalar_lea.sflag [#allocation3], 1
    %357 = vsyncpa %s356, 1
    %358 = vsyncpa [#allocation6], 1
    %s359 = scalar_lea.sflag [#allocation6], 1
    %360 = vsyncpa %s359, 1
    %361 = vsyncpa [#allocation4], 1
    %s362 = scalar_lea.sflag [#allocation4], 1
    %363 = vsyncpa %s362, 1

</llo_original>
